<compile_context>
chip_gen: v6e
topology: v6e:2x2x1
jax: 0.10.0
libtpu: 0.0.40
codegen_flags: <defaults>
</compile_context>

<pallas_src>
import functools
import math

import jax
import jax.numpy as jnp
from jax.experimental import pallas as pl
from jax.experimental.pallas import tpu as pltpu


def _rmsnorm_kernel(x_ref, w_ref, o_ref, *, eps):
    # x_ref: (TM, H), w_ref: (1, H), o_ref: (TM, H)
    x = x_ref[...].astype(jnp.float32)           # upcast for the reduction
    var = jnp.mean(x * x, axis=-1, keepdims=True)  # (TM, 1)
    inv = jax.lax.rsqrt(var + eps)                 # EUP rsqrt
    normed = x * inv
    w = w_ref[...].astype(jnp.float32)             # (1, H), broadcasts over rows
    o_ref[...] = (w * normed).astype(o_ref.dtype)


def llama_rmsnorm(x, weight, *, eps=1e-6, vmem_budget_bytes=32 * 1024 * 1024):
    """RMSNorm over the last axis.  x: (..., H); weight: (H,)."""
    orig_shape = x.shape
    H = orig_shape[-1]
    rows = int(math.prod(orig_shape[:-1])) if len(orig_shape) > 1 else 1

    x2 = x.reshape(rows, H)
    w2 = weight.reshape(1, H)

    # --- choose row tile from the VMEM budget ------------------------------
    # Pipelined VMEM ~= 4 buffers (2x double-buffered input + 2x output) of
    # (tm, H) in the I/O dtype, plus the (1, H) resident weight block.
    itemsize = jnp.dtype(x.dtype).itemsize
    tm_budget = vmem_budget_bytes // max(1, 4 * H * itemsize)
    tm = max(8, min(1024, (tm_budget // 8) * 8))   # multiple of 8 sublanes

    rows_pad8 = ((rows + 7) // 8) * 8              # smallest legal tile count
    tm = min(tm, rows_pad8)

    # Pad rows so the grid divides evenly; padded rows are sliced off after.
    rows_padded = ((rows + tm - 1) // tm) * tm
    if rows_padded != rows:
        x2 = jnp.pad(x2, ((0, rows_padded - rows), (0, 0)))

    grid = (rows_padded // tm,)

    # Raise the scoped VMEM limit enough for the tiles (with headroom), but
    # stay comfortably inside v7x's 64 MiB physical VMEM.
    needed = 4 * tm * H * itemsize + 2 * H * 4 + (2 << 20)
    vmem_limit = int(min(56 * 1024 * 1024, max(needed, 16 * 1024 * 1024)))

    out = pl.pallas_call(
        functools.partial(_rmsnorm_kernel, eps=eps),
        out_shape=jax.ShapeDtypeStruct((rows_padded, H), x.dtype),
        grid_spec=pltpu.PrefetchScalarGridSpec(
            num_scalar_prefetch=0,
            grid=grid,
            in_specs=[
                pl.BlockSpec((tm, H), lambda i: (i, 0)),
                pl.BlockSpec((1, H), lambda i: (0, 0)),   # weight stays resident
            ],
            out_specs=pl.BlockSpec((tm, H), lambda i: (i, 0)),
        ),
        compiler_params=pltpu.CompilerParams(
            dimension_semantics=("parallel",),
            vmem_limit_bytes=vmem_limit,
        ),
    )(x2, w2)

    if rows_padded != rows:
        out = out[:rows]
    return out.reshape(orig_shape)


if __name__ == "__main__":
    # Small, deterministic demo shapes.  H=128 keeps the output lane-dense
    # (real Llama hidden sizes are multiples of 128 too).
    batch, seq, hidden = 2, 8, 128
    key = jax.random.PRNGKey(0)
    x = jax.random.normal(key, (batch, seq, hidden), dtype=jnp.float32)
    # nn.Parameter(torch.ones(hidden_size)) -> deterministic ones, f32.
    weight = jnp.ones((hidden,), dtype=jnp.float32)
    eps = 1e-6

    out = llama_rmsnorm(x, weight, eps=eps)
    out = jax.block_until_ready(out)

    # Reference (matches the PyTorch forward for f32 inputs).
    xf = x.astype(jnp.float32)
    var = jnp.mean(xf * xf, axis=-1, keepdims=True)
    ref = weight * (xf * jax.lax.rsqrt(var + eps))

    assert out.shape == x.shape and out.dtype == x.dtype
    assert jnp.allclose(out, ref.astype(x.dtype), atol=1e-5, rtol=1e-5)

    # Also exercise a rows-not-divisible-by-tile case (tail padding path).
    x_odd = jax.random.normal(jax.random.PRNGKey(1), (3, 5, hidden), jnp.float32)
    out_odd = jax.block_until_ready(llama_rmsnorm(x_odd, weight, eps=eps))
    var_o = jnp.mean(x_odd * x_odd, axis=-1, keepdims=True)
    ref_o = weight * (x_odd * jax.lax.rsqrt(var_o + eps))
    assert jnp.allclose(out_odd, ref_o, atol=1e-5, rtol=1e-5)

    print("KERNEL_OK")
</pallas_src>

<mosaic_0001>
module attributes {stable_mosaic.version = 11 : i64} {
  func.func @_rmsnorm_kernel(%arg0: i32, %arg1: memref<16x128xf32, #tpu.memory_space<vmem>>, %arg2: memref<1x128xf32, #tpu.memory_space<vmem>>, %arg3: memref<16x128xf32, #tpu.memory_space<vmem>>) attributes {dimension_semantics = [#tpu.dimension_semantics<parallel>], iteration_bounds = array<i64: 1>, scalar_prefetch = 0 : i64, scratch_operands = 0 : i64, tpu.core_type = #tpu.core_type<tc>, window_params = [{transform_indices = @transform_0, window_bounds = array<i64: 16, 128>}, {pipeline_mode = #tpu.pipeline_mode<synchronous>, transform_indices = @transform_1, window_bounds = array<i64: 1, 128>}, {transform_indices = @transform_2, window_bounds = array<i64: 16, 128>}]} {
    %c0 = arith.constant 0 : index
    %c0_0 = arith.constant 0 : index
    %0 = vector.load %arg1[%c0, %c0_0] : memref<16x128xf32, #tpu.memory_space<vmem>>, vector<16x128xf32>
    %1 = arith.mulf %0, %0 : vector<16x128xf32>
    %cst = arith.constant dense<0.000000e+00> : vector<16xf32>
    %2 = vector.multi_reduction <add>, %1, %cst [1] : vector<16x128xf32> to vector<16xf32>
    %3 = vector.shape_cast %2 : vector<16xf32> to vector<16x1xf32>
    %cst_1 = arith.constant 1.280000e+02 : f32
    %4 = vector.broadcast %cst_1 : f32 to vector<16x1xf32>
    %5 = arith.divf %3, %4 : vector<16x1xf32>
    %cst_2 = arith.constant 9.99999997E-7 : f32
    %6 = vector.broadcast %cst_2 : f32 to vector<16x1xf32>
    %7 = arith.addf %5, %6 : vector<16x1xf32>
    %8 = math.rsqrt %7 : vector<16x1xf32>
    %9 = vector.broadcast %8 : vector<16x1xf32> to vector<16x128xf32>
    %10 = arith.mulf %0, %9 : vector<16x128xf32>
    %c0_3 = arith.constant 0 : index
    %c0_4 = arith.constant 0 : index
    %11 = vector.load %arg2[%c0_3, %c0_4] : memref<1x128xf32, #tpu.memory_space<vmem>>, vector<1x128xf32>
    %12 = vector.broadcast %11 : vector<1x128xf32> to vector<16x128xf32>
    %13 = arith.mulf %12, %10 : vector<16x128xf32>
    %c0_5 = arith.constant 0 : index
    %c0_6 = arith.constant 0 : index
    %14 = vector.load %arg3[%c0_5, %c0_6] : memref<16x128xf32, #tpu.memory_space<vmem>>, vector<16x128xf32>
    tpu.vector_store %arg3[%c0_5, %c0_6], %13 {strides = array<i32>} : memref<16x128xf32, #tpu.memory_space<vmem>>, vector<16x128xf32>,
    return
  }
  func.func @transform_0(%arg0: i32) -> (i32, i32) {
    %c0_i32 = arith.constant 0 : i32
    %c0_i32_0 = arith.constant 0 : i32
    return %arg0, %c0_i32 : i32, i32
  }
  func.func @transform_1(%arg0: i32) -> (i32, i32) {
    %c0_i32 = arith.constant 0 : i32
    %c0_i32_0 = arith.constant 0 : i32
    %c0_i32_1 = arith.constant 0 : i32
    return %c0_i32, %c0_i32_0 : i32, i32
  }
  func.func @transform_2(%arg0: i32) -> (i32, i32) {
    %c0_i32 = arith.constant 0 : i32
    %c0_i32_0 = arith.constant 0 : i32
    return %arg0, %c0_i32 : i32, i32
  }
}

</mosaic_0001>

<llo_original>
// kernel: tpu_custom_call.1
$region0: #{tpu_custom_call.1}
  #allocation0 [shape = 'u32[]', space=smem, size = 0x4, offset = 0x4, fixed_abs, tag = 'smem constant byte address 0x4 - core index']
  #allocation1 [shape = 'u32[144,128]{1,0:T(1,128)}', space=vmem, size = 0x12000, scoped, tag = 'internal scratch']
  %s0 = inlined_call_operand.hbm [shape: f32[16,128], index: 0, kind: input, shape index: {}]
  %s1 = inlined_call_operand.vmem [shape: f32[1,128], index: 1, kind: input, shape index: {}]
  %s2 = inlined_call_operand.hbm [shape: f32[16,128], index: 2, kind: output, shape index: {}]
  %s3 = sld [smem:[#allocation0]]
  $region22: #{tpu_custom_call.1} parent=0
    _
  %s5 = ssub.s32 1, %s3
  %s6 = scalar_select 0, %s5, %s3
  $region1: #{tpu_custom_call.1} parent=0
    #allocation2 [shape = 'u8[8192]{0}', space=vmem, size = 0x2000, scoped, tag = 'input window, operand 0, single buffered']
    #allocation3 [shape = 's32[1]{0}', space=sflag, size = 0x4, scoped, tag = 'scoped memory for tpu_custom_call.1']
    #allocation4 [shape = 's32[1]{0}', space=sflag, size = 0x4, scoped, tag = 'scoped memory for tpu_custom_call.1']
    #allocation5 [shape = 'u8[8192]{0}', space=vmem, size = 0x2000, scoped, tag = 'output window, operand 0, single buffered']
    %7 = vsyncpa [#allocation3], 0
    %8 = vsyncpa [#allocation4], 0
    // Predicated region
    $region2: #{tpu_custom_call.1} parent=1 // pred_check
      _
    $region3: #{tpu_custom_call.1} parent=1 // pred_check_branch
      %10 = sbr.rel (0) target = $region5
    $region4: #{tpu_custom_call.1} parent=1 // pred_region
      %s12 = ssub.s32 256, 256
      %13 = vsyncadd [#allocation3], %s12
      %s14 = sshll.u32 [#allocation2], 4
      %s15 = int_to_ptr.vmem [resolvable:$true] %s14
      %20 = dma.hbm_to_vmem [thread:$0]  %s0, 256, %s15, [#allocation3], 128, 128, 8
    $region5: #{tpu_custom_call.1} parent=1 // pred_fallthru
      _
    // Predicated region
    $region6: #{tpu_custom_call.1} parent=1 // pred_check
      _
    $region7: #{tpu_custom_call.1} parent=1 // pred_check_branch
      %22 = sbr.rel (0) target = $region9
    $region8: #{tpu_custom_call.1} parent=1 // pred_region
      _
    $region9: #{tpu_custom_call.1} parent=1 // pred_fallthru
      _
    // Predicated region
    $region10: #{tpu_custom_call.1} parent=1 // pred_check
      _
    $region11: #{tpu_custom_call.1} parent=1 // pred_check_branch
      %24 = sbr.rel (0) target = $region13
    $region12: #{tpu_custom_call.1} parent=1 // pred_region
      %25 = dma.done [#allocation3], 256
    $region13: #{tpu_custom_call.1} parent=1 // pred_fallthru
      _
    %v26 = vld [vmem:[#allocation2] sm:$0xff]
    %v27 = vld [vmem:[#allocation2 + $0x8] sm:$0xff]
    %v28 = vmul.f32 %v26, %v26
    %v29 = vmul.f32 %v27, %v27
    %30 = vadd.xlane.f32.xlu0 %v28
    %v31 = vpop.xlane.xlu0 %30
    %32 = vadd.xlane.f32.xlu0 %v29
    %v33 = vpop.xlane.xlu0 %32
    %v34 = vrcp.pop 128.0
    %v35 = vmul.f32 %v31, %v34
    %v36 = vmul.f32 %v33, %v34
    %v37 = vadd.f32 %v35, 1e-06
    %v38 = vadd.f32 %v36, 1e-06
    %v39 = vrsqrt.pop %v37
    %v40 = vrsqrt.pop %v38
    %v41 = vmul.f32 %v26, %v39
    %v42 = vmul.f32 %v27, %v40
    %v43 = vld [vmem:[%s1] sm:$0x1]
    %v45 = vlaneseq
    %v46 = vshrl.u32 %v45, 7
    %v47 = vsub.s32 0, %v46
    %v48 = vrot.slane %v43, %v47
    %v50 = vmul.f32 %v48, %v41
    %v51 = vmul.f32 %v48, %v42
    %52 = vst [vmem:[#allocation5] sm:$0xff] %v50
    %53 = vst [vmem:[#allocation5 + $0x8] sm:$0xff] %v51
    // Predicated region
    $region14: #{tpu_custom_call.1} parent=1 // pred_check
      _
    $region15: #{tpu_custom_call.1} parent=1 // pred_check_branch
      %55 = sbr.rel (0) target = $region17
    $region16: #{tpu_custom_call.1} parent=1 // pred_region
      %s57 = ssub.s32 256, 256
      %58 = vsyncadd [#allocation4], %s57
      %s59 = sshll.u32 [#allocation5], 4
      %s60 = int_to_ptr.vmem [resolvable:$true] %s59
      %65 = dma.vmem_to_hbm [thread:$0]  %s60, 256, %s2, [#allocation4], 128, 128, 8
    $region17: #{tpu_custom_call.1} parent=1 // pred_fallthru
      _
    // Predicated region
    $region18: #{tpu_custom_call.1} parent=1 // pred_check
      _
    $region19: #{tpu_custom_call.1} parent=1 // pred_check_branch
      %67 = sbr.rel (0) target = $region21
    $region20: #{tpu_custom_call.1} parent=1 // pred_region
      %68 = dma.done [#allocation4], 256
    $region21: #{tpu_custom_call.1} parent=1 // pred_fallthru
      _
    %69 = vsyncpa [#allocation3], 1
    %70 = vsyncpa [#allocation4], 1

</llo_original>
